<compile_context>
chip_gen: v7x
topology: tpu7x:2x2x1
jax: 0.10.0
libtpu: 0.0.40
codegen_flags: <defaults>
</compile_context>

<pallas_src>
import functools

import numpy as np
import jax
import jax.numpy as jnp
from jax.experimental import pallas as pl
from jax.experimental.pallas import tpu as pltpu


def _vmem_capacity_bytes():
    """Physical VMEM per TensorCore; conservative default if the query fails."""
    try:
        return int(pltpu.get_tpu_info().vmem_capacity_bytes)
    except Exception:
        return 64 << 20  # v7x per-TC floor


def _evonorm_s0_fused_kernel(*refs, gpb, cg, eps):
    # refs: (x_ref, p_ref[, sel_ref], o_ref)
    #   x_ref:   (1, cgb, S)  current (batch, channel-block) tile, input dtype
    #   p_ref:   (3, cgb, 1)  stacked (v, gamma, beta), f32
    #   sel_ref: (cgb, cgb)   0/1 same-group indicator (only when gpb > 1)
    if gpb > 1:
        x_ref, p_ref, sel_ref, o_ref = refs
    else:
        x_ref, p_ref, o_ref = refs
        sel_ref = None

    x = x_ref[0]                              # (cgb, S) in the input dtype
    cgb, S = x.shape
    xf = x.astype(jnp.float32)                # f32 accumulation for statistics
    n = cg * S

    v = p_ref[0]                              # (cgb, 1) f32
    gamma = p_ref[1]
    beta = p_ref[2]

    # --- per-(batch, group) statistics: two-pass (mean, then centered squares) ---
    if gpb == 1:
        mean = jnp.sum(xf) * (1.0 / n)
        d = xf - mean
        var = jnp.sum(d * d) * (1.0 / (n - 1))          # unbiased (torch default)
        inv_c = jax.lax.rsqrt(var + eps)                 # scalar
    else:
        sel = sel_ref[...]                                # (cgb, cgb) 0/1
        s1_c = jnp.sum(xf, axis=-1, keepdims=True)        # (cgb, 1) lane reduce
        # Group aggregation + broadcast-back as one selector matmul (idle MXU).
        mean_c = jnp.dot(sel, s1_c,
                         precision=jax.lax.Precision.HIGHEST,
                         preferred_element_type=jnp.float32) * (1.0 / n)
        d = xf - mean_c
        ss_c = jnp.sum(d * d, axis=-1, keepdims=True)     # (cgb, 1)
        var_c = jnp.dot(sel, ss_c,
                        precision=jax.lax.Precision.HIGHEST,
                        preferred_element_type=jnp.float32) * (1.0 / (n - 1))
        inv_c = jax.lax.rsqrt(var_c + eps)                # (cgb, 1)

    scale = gamma * inv_c                                 # gamma / std folded, f32

    # --- elementwise apply in the input dtype (bf16-native VPU on v6e/v7x) ---
    cdt = x.dtype
    xv = x * v.astype(cdt)
    sig = 0.5 * (jnp.tanh(0.5 * xv) + 1.0)                # sigmoid via EUP tanh
    num = x * sig
    o_ref[0] = (num * scale.astype(cdt) + beta.astype(cdt)).astype(o_ref.dtype)


def _evonorm_s0_apply_kernel(x_ref, vb_ref, sc_ref, o_ref):
    # Elementwise apply for the two-pass (large-volume) fallback.
    #   x_ref: (1, C, Ts); vb_ref: (2, C, 1) = (v, beta); sc_ref: (1, C, 1) scale.
    x = x_ref[0]
    cdt = x.dtype
    v = vb_ref[0].astype(cdt)
    beta = vb_ref[1].astype(cdt)
    scale = sc_ref[0].astype(cdt)            # gamma * rsqrt(var + eps) per (b, c)
    sig = 0.5 * (jnp.tanh(0.5 * (x * v)) + 1.0)
    o_ref[0] = (x * sig * scale + beta).astype(o_ref.dtype)


def evonorm3d_s0(x, v, gamma, beta, *, groups=None, eps=1e-5,
                 force_two_pass=False, s_tile=None, donate_input=False):
    """x: (B, C, D, H, W).  v/gamma/beta: (C, 1, 1, 1) (PyTorch parameter shapes)."""
    B, C, D, H, W = x.shape
    if groups is None:
        groups = max(C // 8, 1)
    assert C % groups == 0
    cg = C // groups
    S = D * H * W
    itemsize = jnp.dtype(x.dtype).itemsize

    vmem_cap = _vmem_capacity_bytes()
    budget = int(0.75 * vmem_cap)

    x2 = x.reshape(B, C, S)
    io_aliases = {0: 0} if donate_input else {}

    # Per-element VMEM footprint of the fused kernel: double-buffered in/out blocks
    # plus ~4 f32-sized intermediates that Mosaic materializes in VMEM.
    fused_bytes_per_elem = 4 * itemsize + 16
    max_fused_elems = max((budget - (4 << 20)) // fused_bytes_per_elem, 1)

    use_fused = (not force_two_pass) and (cg * S <= max_fused_elems)

    gpb, cgb = 1, cg
    if use_fused:
        # Size-driven groups-per-block: grow blocks to ~2 MiB of I/O (measured HBM
        # sweet spot) subject to the VMEM budget and (8,128)/packing layout rules.
        target_elems = min((2 << 20) // itemsize, max_fused_elems)
        gpb_cap = max(min(target_elems // (cg * S), groups), 1)
        gpb_cap = min(gpb_cap, max(512 // cg, 1))   # keep the selector matrix small
        sub_mult = 16 if itemsize == 2 else 8       # bf16 packs 2 rows per sublane
        chosen = None
        for mult in (sub_mult, 8):
            for cand in range(gpb_cap, 0, -1):
                if groups % cand:
                    continue
                if (cand * cg) % mult == 0 or cand * cg == C:
                    chosen = cand
                    break
            if chosen is not None:
                break
        gpb = chosen if chosen is not None else groups   # cgb == C always legal
        cgb = gpb * cg
        if cgb * S > max_fused_elems:               # mis-aligned groups forced cgb up
            use_fused = False

    if use_fused:
        num_cblocks = groups // gpb
        params = (
            jnp.stack([v.reshape(C), gamma.reshape(C), beta.reshape(C)], axis=0)
            .astype(jnp.float32)
            .reshape(3, C, 1)
        )

        in_specs = [
            pl.BlockSpec((1, cgb, S), lambda g, b: (b, g, 0)),     # x tile
            pl.BlockSpec((3, cgb, 1), lambda g, b: (0, g, 0)),     # (v, gamma, beta)
        ]
        args = [x2, params]
        sel_bytes = 0
        if gpb > 1:
            gid = np.arange(cgb) // cg
            sel = jnp.asarray((gid[:, None] == gid[None, :]).astype(np.float32))
            in_specs.append(pl.BlockSpec((cgb, cgb), lambda g, b: (0, 0)))
            args.append(sel)
            sel_bytes = 2 * cgb * cgb * 4           # double-buffered selector

        # Scoped VMEM sized from the real need; never clamp below it, cap at 90%
        # of the chip's physical VMEM (64 MiB v7x, 128 MiB v5e/v6e).
        need = fused_bytes_per_elem * cgb * S + sel_bytes + (4 << 20)
        vmem_limit = int(min(max(need, 8 << 20), int(0.9 * vmem_cap)))

        kernel = functools.partial(_evonorm_s0_fused_kernel, gpb=gpb, cg=cg, eps=eps)
        out = pl.pallas_call(
            kernel,
            # Group-block outer, batch inner: params/selector block indices stay
            # constant across consecutive (inner) steps -> no re-DMA per step.
            grid=(num_cblocks, B),
            in_specs=in_specs,
            out_specs=pl.BlockSpec((1, cgb, S), lambda g, b: (b, g, 0)),
            out_shape=jax.ShapeDtypeStruct((B, C, S), x.dtype),
            compiler_params=pltpu.CompilerParams(
                dimension_semantics=("parallel", "parallel"),
                vmem_limit_bytes=vmem_limit,
            ),
            input_output_aliases=io_aliases,
        )(*args)
        return out.reshape(B, C, D, H, W)

    # ---- two-pass fallback: volumes too large for one (channels, S) VMEM block ----
    # Pass 1 (stats): plain-XLA two-pass reduction (also HBM-bound), folded into a
    #                 per-(batch, channel) scale = gamma * rsqrt(var + eps).
    # Pass 2 (apply): S-tiled elementwise Pallas kernel.
    # TODO(synk): a fully-Pallas pass 1 (accumulating sums across an S grid axis)
    # would save one extra HBM read of x; XLA's reduction is used here for simplicity.
    n = cg * S
    xg = x2.reshape(B, groups, cg, S).astype(jnp.float32)
    mean = jnp.mean(xg, axis=(2, 3), keepdims=True)
    dlt = xg - mean
    var = jnp.sum(dlt * dlt, axis=(2, 3), keepdims=True) / (n - 1)
    inv = jax.lax.rsqrt(var + eps)                                   # (B, G, 1, 1)
    inv_bc = jnp.broadcast_to(inv, (B, groups, cg, 1)).reshape(B, C, 1)
    scale = gamma.reshape(1, C, 1).astype(jnp.float32) * inv_bc      # (B, C, 1)
    vb = (jnp.stack([v.reshape(C), beta.reshape(C)], axis=0)
          .astype(jnp.float32).reshape(2, C, 1))

    apply_bytes_per_elem = 6 * itemsize      # 2x2-buffered I/O + ~2 temporaries
    max_ts = max((budget - (4 << 20)) // (apply_bytes_per_elem * C), 128)
    if s_tile is not None:
        ts = int(s_tile)
    elif S <= max_ts:
        ts = S
    else:
        ts = None
        t = (min(max_ts, S) // 128) * 128
        while t >= 128:
            if S % t == 0:
                ts = t
                break
            t -= 128
        if ts is None:
            ts = S                            # no 128-aligned divisor; one big block
    assert S % ts == 0, "s_tile must divide D*H*W"

    need = apply_bytes_per_elem * C * ts + (4 << 20)
    vmem_limit = int(min(max(need, 8 << 20), int(0.9 * vmem_cap)))

    out = pl.pallas_call(
        _evonorm_s0_apply_kernel,
        grid=(B, S // ts),
        in_specs=[
            pl.BlockSpec((1, C, ts), lambda b, s: (b, 0, s)),
            pl.BlockSpec((2, C, 1), lambda b, s: (0, 0, 0)),
            pl.BlockSpec((1, C, 1), lambda b, s: (b, 0, 0)),
        ],
        out_specs=pl.BlockSpec((1, C, ts), lambda b, s: (b, 0, s)),
        out_shape=jax.ShapeDtypeStruct((B, C, S), x.dtype),
        compiler_params=pltpu.CompilerParams(
            dimension_semantics=("parallel", "parallel"),
            vmem_limit_bytes=vmem_limit,
        ),
        input_output_aliases=io_aliases,
    )(x2, vb, scale)
    return out.reshape(B, C, D, H, W)


def evonorm3d_s0_ref(x, v, gamma, beta, *, eps=1e-5):
    """Pure-JAX reference mirroring the PyTorch forward (exact match at B == 1;
    natural per-sample generalization for B > 1)."""
    B, C, D, H, W = x.shape
    G = max(C // 8, 1)
    cg = C // G
    xg = x.reshape(B, G, cg, D, H, W)
    var = jnp.var(xg, axis=(2, 3, 4, 5), keepdims=True, ddof=1)
    std = jnp.sqrt(var + eps)
    std = jnp.broadcast_to(std, (B, G, cg, 1, 1, 1)).reshape(B, C, 1, 1, 1)
    v_b = v.reshape(1, C, 1, 1, 1)
    g_b = gamma.reshape(1, C, 1, 1, 1)
    b_b = beta.reshape(1, C, 1, 1, 1)
    num = x * jax.nn.sigmoid(x * v_b)
    return num * g_b / std + b_b


if __name__ == "__main__":
    key = jax.random.PRNGKey(0)
    kx, kv, kg, kb, kx2 = jax.random.split(key, 5)

    # Small NCDHW shapes.  C=16 -> G=2 groups of 8 channels, S = 4*8*8 = 256.
    C, D, H, W = 16, 4, 8, 8
    # Deterministic non-trivial params; __init__ shapes are (C, 1, 1, 1).
    v = 1.0 + 0.1 * jax.random.normal(kv, (C, 1, 1, 1), dtype=jnp.float32)
    gamma = 1.0 + 0.1 * jax.random.normal(kg, (C, 1, 1, 1), dtype=jnp.float32)
    beta = 0.1 * jax.random.normal(kb, (C, 1, 1, 1), dtype=jnp.float32)

    # Case 1: B=1 -- matches the literal PyTorch reference (whose group_std reshape
    # only type-checks at batch size 1).
    x1 = jax.random.normal(kx, (1, C, D, H, W), dtype=jnp.float32)
    out1 = jax.block_until_ready(evonorm3d_s0(x1, v, gamma, beta))
    ref1 = evonorm3d_s0_ref(x1, v, gamma, beta)
    assert out1.shape == x1.shape
    assert jnp.allclose(out1, ref1, atol=1e-4, rtol=1e-4), "B=1 mismatch vs reference"

    # Case 2: B=2 -- per-sample group statistics; multi-step (channel-block, batch) grid.
    x2 = jax.random.normal(kx2, (2, C, D, H, W), dtype=jnp.float32)
    out2 = jax.block_until_ready(evonorm3d_s0(x2, v, gamma, beta))
    ref2 = evonorm3d_s0_ref(x2, v, gamma, beta)
    assert out2.shape == x2.shape
    assert jnp.allclose(out2, ref2, atol=1e-4, rtol=1e-4), "B=2 mismatch vs reference"

    # Case 3: bf16 I/O exercises the bf16-native elementwise path (f32 statistics).
    xb = x2.astype(jnp.bfloat16)
    outb = jax.block_until_ready(evonorm3d_s0(xb, v, gamma, beta))
    refb = evonorm3d_s0_ref(xb.astype(jnp.float32), v, gamma, beta)
    assert jnp.allclose(outb.astype(jnp.float32), refb, atol=5e-2, rtol=5e-2), \
        "bf16 mismatch vs reference"

    # Case 4: forced large-volume (two-pass, S-tiled) fallback on the small shape.
    out3 = jax.block_until_ready(
        evonorm3d_s0(x2, v, gamma, beta, force_two_pass=True, s_tile=128))
    assert jnp.allclose(out3, ref2, atol=1e-4, rtol=1e-4), "two-pass path mismatch"

    print("KERNEL_OK")
</pallas_src>

<mosaic_0001>
module attributes {stable_mosaic.version = 11 : i64} {
  func.func @_evonorm_s0_fused_kernel(%arg0: i32, %arg1: i32, %arg2: memref<1x16x256xf32, #tpu.memory_space<vmem>>, %arg3: memref<3x16x1xf32, #tpu.memory_space<vmem>>, %arg4: memref<16x16xf32, #tpu.memory_space<vmem>>, %arg5: memref<1x16x256xf32, #tpu.memory_space<vmem>>) attributes {dimension_semantics = [#tpu.dimension_semantics<parallel>, #tpu.dimension_semantics<parallel>], iteration_bounds = array<i64: 1, 1>, scalar_prefetch = 0 : i64, scratch_operands = 0 : i64, tpu.core_type = #tpu.core_type<tc>, window_params = [{transform_indices = @transform_0, window_bounds = array<i64: 1, 16, 256>}, {transform_indices = @transform_1, window_bounds = array<i64: 3, 16, 1>}, {pipeline_mode = #tpu.pipeline_mode<synchronous>, transform_indices = @transform_2, window_bounds = array<i64: 16, 16>}, {transform_indices = @transform_3, window_bounds = array<i64: 1, 16, 256>}]} {
    %c0 = arith.constant 0 : index
    %c0_0 = arith.constant 0 : index
    %c0_1 = arith.constant 0 : index
    %0 = vector.load %arg2[%c0, %c0_0, %c0_1] : memref<1x16x256xf32, #tpu.memory_space<vmem>>, vector<1x16x256xf32>
    %1 = vector.shape_cast %0 : vector<1x16x256xf32> to vector<16x256xf32>
    %c0_2 = arith.constant 0 : index
    %c0_3 = arith.constant 0 : index
    %c0_4 = arith.constant 0 : index
    %2 = vector.load %arg3[%c0_2, %c0_3, %c0_4] : memref<3x16x1xf32, #tpu.memory_space<vmem>>, vector<1x16x1xf32>
    %3 = vector.shape_cast %2 : vector<1x16x1xf32> to vector<16x1xf32>
    %c1 = arith.constant 1 : index
    %c0_5 = arith.constant 0 : index
    %c0_6 = arith.constant 0 : index
    %4 = vector.load %arg3[%c1, %c0_5, %c0_6] : memref<3x16x1xf32, #tpu.memory_space<vmem>>, vector<1x16x1xf32>
    %5 = vector.shape_cast %4 : vector<1x16x1xf32> to vector<16x1xf32>
    %c2 = arith.constant 2 : index
    %c0_7 = arith.constant 0 : index
    %c0_8 = arith.constant 0 : index
    %6 = vector.load %arg3[%c2, %c0_7, %c0_8] : memref<3x16x1xf32, #tpu.memory_space<vmem>>, vector<1x16x1xf32>
    %7 = vector.shape_cast %6 : vector<1x16x1xf32> to vector<16x1xf32>
    %c0_9 = arith.constant 0 : index
    %c0_10 = arith.constant 0 : index
    %8 = vector.load %arg4[%c0_9, %c0_10] : memref<16x16xf32, #tpu.memory_space<vmem>>, vector<16x16xf32>
    %cst = arith.constant dense<0.000000e+00> : vector<16xf32>
    %9 = vector.multi_reduction <add>, %1, %cst [1] : vector<16x256xf32> to vector<16xf32>
    %10 = vector.shape_cast %9 : vector<16xf32> to vector<16x1xf32>
    %cst_11 = arith.constant dense<0.000000e+00> : vector<16x1xf32>
    %11 = tpu.matmul %8, %10, %cst_11 {dimension_numbers = #tpu.dot_dimension_numbers<[1], [0], [0], [1], [0, 0, 1, 1], [], []>, precision = #tpu.contract_precision<fp32>} : vector<16x16xf32>, vector<16x1xf32>, vector<16x1xf32> -> vector<16x1xf32>
    %cst_12 = arith.constant 4.8828125E-4 : f32
    %12 = vector.broadcast %cst_12 : f32 to vector<16x1xf32>
    %13 = arith.mulf %11, %12 : vector<16x1xf32>
    %14 = vector.broadcast %13 : vector<16x1xf32> to vector<16x256xf32>
    %15 = arith.subf %1, %14 : vector<16x256xf32>
    %16 = arith.mulf %15, %15 : vector<16x256xf32>
    %cst_13 = arith.constant dense<0.000000e+00> : vector<16xf32>
    %17 = vector.multi_reduction <add>, %16, %cst_13 [1] : vector<16x256xf32> to vector<16xf32>
    %18 = vector.shape_cast %17 : vector<16xf32> to vector<16x1xf32>
    %cst_14 = arith.constant dense<0.000000e+00> : vector<16x1xf32>
    %19 = tpu.matmul %8, %18, %cst_14 {dimension_numbers = #tpu.dot_dimension_numbers<[1], [0], [0], [1], [0, 0, 1, 1], [], []>, precision = #tpu.contract_precision<fp32>} : vector<16x16xf32>, vector<16x1xf32>, vector<16x1xf32> -> vector<16x1xf32>
    %cst_15 = arith.constant 4.88519785E-4 : f32
    %20 = vector.broadcast %cst_15 : f32 to vector<16x1xf32>
    %21 = arith.mulf %19, %20 : vector<16x1xf32>
    %cst_16 = arith.constant 9.99999974E-6 : f32
    %22 = vector.broadcast %cst_16 : f32 to vector<16x1xf32>
    %23 = arith.addf %21, %22 : vector<16x1xf32>
    %24 = math.rsqrt %23 : vector<16x1xf32>
    %25 = arith.mulf %5, %24 : vector<16x1xf32>
    %26 = vector.broadcast %3 : vector<16x1xf32> to vector<16x256xf32>
    %27 = arith.mulf %1, %26 : vector<16x256xf32>
    %cst_17 = arith.constant 5.000000e-01 : f32
    %28 = vector.broadcast %cst_17 : f32 to vector<16x256xf32>
    %29 = arith.mulf %28, %27 : vector<16x256xf32>
    %30 = math.tanh %29 : vector<16x256xf32>
    %cst_18 = arith.constant 1.000000e+00 : f32
    %31 = vector.broadcast %cst_18 : f32 to vector<16x256xf32>
    %32 = arith.addf %30, %31 : vector<16x256xf32>
    %cst_19 = arith.constant 5.000000e-01 : f32
    %33 = vector.broadcast %cst_19 : f32 to vector<16x256xf32>
    %34 = arith.mulf %33, %32 : vector<16x256xf32>
    %35 = arith.mulf %1, %34 : vector<16x256xf32>
    %36 = vector.broadcast %25 : vector<16x1xf32> to vector<16x256xf32>
    %37 = arith.mulf %35, %36 : vector<16x256xf32>
    %38 = vector.broadcast %7 : vector<16x1xf32> to vector<16x256xf32>
    %39 = arith.addf %37, %38 : vector<16x256xf32>
    %c0_20 = arith.constant 0 : index
    %c0_21 = arith.constant 0 : index
    %c0_22 = arith.constant 0 : index
    %40 = vector.load %arg5[%c0_20, %c0_21, %c0_22] : memref<1x16x256xf32, #tpu.memory_space<vmem>>, vector<1x16x256xf32>
    %41 = vector.shape_cast %40 : vector<1x16x256xf32> to vector<16x256xf32>
    %42 = vector.shape_cast %39 : vector<16x256xf32> to vector<1x16x256xf32>
    tpu.vector_store %arg5[%c0_20, %c0_21, %c0_22], %42 {strides = array<i32>} : memref<1x16x256xf32, #tpu.memory_space<vmem>>, vector<1x16x256xf32>,
    return
  }
  func.func @transform_0(%arg0: i32, %arg1: i32) -> (i32, i32, i32) {
    %c0_i32 = arith.constant 0 : i32
    %c0_i32_0 = arith.constant 0 : i32
    return %arg1, %arg0, %c0_i32 : i32, i32, i32
  }
  func.func @transform_1(%arg0: i32, %arg1: i32) -> (i32, i32, i32) {
    %c0_i32 = arith.constant 0 : i32
    %c0_i32_0 = arith.constant 0 : i32
    %c0_i32_1 = arith.constant 0 : i32
    return %c0_i32, %arg0, %c0_i32_0 : i32, i32, i32
  }
  func.func @transform_2(%arg0: i32, %arg1: i32) -> (i32, i32) {
    %c0_i32 = arith.constant 0 : i32
    %c0_i32_0 = arith.constant 0 : i32
    %c0_i32_1 = arith.constant 0 : i32
    return %c0_i32, %c0_i32_0 : i32, i32
  }
  func.func @transform_3(%arg0: i32, %arg1: i32) -> (i32, i32, i32) {
    %c0_i32 = arith.constant 0 : i32
    %c0_i32_0 = arith.constant 0 : i32
    return %arg1, %arg0, %c0_i32 : i32, i32, i32
  }
}

</mosaic_0001>

<llo_original>
// kernel: tpu_custom_call.1
$region0: #{tpu_custom_call.1}
  #allocation0 [shape = 'u32[]', space=smem, size = 0x4, offset = 0x4, fixed_abs, tag = 'smem constant byte address 0x4 - core index']
  #allocation1 [shape = 'u32[144,128]{1,0:T(1,128)}', space=vmem, size = 0x12000, scoped, tag = 'internal scratch']
  %s0 = inlined_call_operand.vmem [shape: f32[1,16,256], index: 0, kind: input, shape index: {}]
  %s1 = inlined_call_operand.vmem [shape: f32[3,16,1], index: 1, kind: input, shape index: {}]
  %s2 = inlined_call_operand.vmem [shape: f32[16,16], index: 2, kind: input, shape index: {}]
  %s3 = inlined_call_operand.hbm [shape: f32[1,16,256], index: 3, kind: output, shape index: {}]
  %s4 = sld [smem:[#allocation0]]
  $region22: #{tpu_custom_call.1} parent=0
    _
  %s6 = ssub.s32 1, %s4
  %s7 = scalar_select 0, %s6, %s4
  $region1: #{tpu_custom_call.1} parent=0
    #allocation2 [shape = 'u8[16384]{0}', space=vmem, size = 0x4000, scoped, tag = 'output window, operand 0, single buffered']
    #allocation3 [shape = 's32[1]{0}', space=sflag, size = 0x4, scoped, tag = 'scoped memory for tpu_custom_call.1']
    %8 = vsyncpa [#allocation3], 0
    // Predicated region
    $region2: #{tpu_custom_call.1} parent=1 // pred_check
      _
    $region3: #{tpu_custom_call.1} parent=1 // pred_check_branch
      %10 = sbr.rel (0) target = $region5
    $region4: #{tpu_custom_call.1} parent=1 // pred_region
      _
    $region5: #{tpu_custom_call.1} parent=1 // pred_fallthru
      _
    // Predicated region
    $region6: #{tpu_custom_call.1} parent=1 // pred_check
      _
    $region7: #{tpu_custom_call.1} parent=1 // pred_check_branch
      %12 = sbr.rel (0) target = $region9
    $region8: #{tpu_custom_call.1} parent=1 // pred_region
      _
    $region9: #{tpu_custom_call.1} parent=1 // pred_fallthru
      _
    // Predicated region
    $region10: #{tpu_custom_call.1} parent=1 // pred_check
      _
    $region11: #{tpu_custom_call.1} parent=1 // pred_check_branch
      %14 = sbr.rel (0) target = $region13
    $region12: #{tpu_custom_call.1} parent=1 // pred_region
      _
    $region13: #{tpu_custom_call.1} parent=1 // pred_fallthru
      _
    %v15 = vld [vmem:[%s0] sm:$0xff]
    %v16 = vld [vmem:[%s0 + $0x8] sm:$0xff]
    %v17 = vld [vmem:[%s0 + $0x10] sm:$0xff]
    %v18 = vld [vmem:[%s0 + $0x18] sm:$0xff]
    %v19 = vld [vmem:[%s1] sm:$0xff]
    %v20 = vld [vmem:[%s1 + $0x8] sm:$0xff]
    %s21 = scalar_lea.vmem %s1, 16
    %v22 = vld [vmem:[%s21] sm:$0xff]
    %v23 = vld [vmem:[%s21 + $0x8] sm:$0xff]
    %s24 = scalar_lea.vmem %s1, 32
    %v25 = vld [vmem:[%s24] sm:$0xff]
    %v26 = vld [vmem:[%s24 + $0x8] sm:$0xff]
    %v27 = vld [vmem:[%s2] sm:$0xff]
    %v28 = vld [vmem:[%s2 + $0x8] sm:$0xff]
    %v29 = vadd.f32 %v15, %v16
    %30 = vadd.xlane.f32.xlu0 %v29
    %v31 = vpop.xlane.xlu0 %30
    %v32 = vadd.f32 %v17, %v18
    %33 = vadd.xlane.f32.xlu0 %v32
    %v34 = vpop.xlane.xlu0 %33
    %vm35 = vcmask 130048
    %v37 = vsel %vm35, %v27, 0
    %v40 = vsel %vm35, %v28, 0
    %42 = vmatprep.subr.mxu0 0.0
    %v43 = vand.u32 %v31, 4294901760
    %44 = vmatpush1.msra.mxu0 %v43
    %45 = vmatprep.subr.mxu0 0.0
    %v46 = vand.u32 %v34, 4294901760
    %47 = vmatpush1.msra.mxu0 %v46
    %48 = vmatprep.subr.mxu0 0.0
    %49 = vmatpush1.msra.mxu0 0.0
    %50 = vmatprep.subr.mxu0 0.0
    %51 = vmatpush1.msra.mxu0 0.0
    %52 = vmatprep.subr.mxu0 0.0
    %53 = vmatpush1.msra.mxu0 0.0
    %54 = vmatprep.subr.mxu0 0.0
    %55 = vmatpush1.msra.mxu0 0.0
    %56 = vmatprep.subr.mxu0 0.0
    %57 = vmatpush1.msra.mxu0 0.0
    %58 = vmatprep.subr.mxu0 0.0
    %59 = vmatpush1.msra.mxu0 0.0
    %60 = vmatprep.subr.mxu0 0.0
    %61 = vmatpush1.msra.mxu0 0.0
    %62 = vmatprep.subr.mxu0 0.0
    %63 = vmatpush1.msra.mxu0 0.0
    %64 = vmatprep.subr.mxu0 0.0
    %65 = vmatpush1.msra.mxu0 0.0
    %66 = vmatprep.subr.mxu0 0.0
    %67 = vmatpush1.msra.mxu0 0.0
    %68 = vmatprep.subr.mxu0 0.0
    %69 = vmatpush1.msra.mxu0 0.0
    %70 = vmatprep.subr.mxu0 0.0
    %71 = vmatpush1.msra.mxu0 0.0
    %72 = vmatprep.subr.mxu0 0.0
    %73 = vmatpush1.msra.mxu0 0.0
    %74 = vmatprep.subr.mxu0 0.0
    %75 = vmatpush1.msra.mxu0 0.0
    %76 = vmatprep.subr.mxu0 0.0
    %77 = vmatpush1.msra.mxu0 0.0
    %78 = vmatprep.subr.mxu0 0.0
    %79 = vmatpush1.msra.mxu0 0.0
    %80 = vmatprep.subr.mxu0 0.0
    %81 = vmatpush1.msra.mxu0 0.0
    %82 = vmatprep.subr.mxu0 0.0
    %83 = vmatpush1.msra.mxu0 0.0
    %84 = vmatprep.subr.mxu0 0.0
    %85 = vmatpush1.msra.mxu0 0.0
    %86 = vmatprep.subr.mxu0 0.0
    %87 = vmatpush1.msra.mxu0 0.0
    %88 = vmatprep.subr.mxu0 0.0
    %89 = vmatpush1.msra.mxu0 0.0
    %90 = vmatprep.subr.mxu0 0.0
    %91 = vmatpush1.msra.mxu0 0.0
    %92 = vmatprep.subr.mxu0 0.0
    %93 = vmatpush1.msra.mxu0 0.0
    %94 = vmatprep.subr.mxu0 0.0
    %95 = vmatpush1.msra.mxu0 0.0
    %96 = vmatprep.subr.mxu0 0.0
    %97 = vmatpush1.msra.mxu0 0.0
    %98 = vmatprep.subr.mxu0 0.0
    %99 = vmatpush1.msra.mxu0 0.0
    %100 = vmatprep.subr.mxu0 0.0
    %101 = vmatpush1.msra.mxu0 0.0
    %102 = vmatprep.subr.mxu0 0.0
    %103 = vmatpush1.msra.mxu0 0.0
    %104 = vmatprep.subr.mxu0 0.0
    %105 = vmatpush1.msra.mxu0 0.0
    %106 = vmatprep.subr.mxu0 0.0
    %107 = vmatpush1.msra.mxu0 0.0
    %108 = vmatprep.mubr.f32.mxu0 0.0
    %v109 = vand.u32 %v37, 4294901760
    %v110 = vsub.f32 %v37, %v109
    %v111 = vand.u32 %v110, 4294901760
    %v112 = vsub.f32 %v110, %v111
    %v113 = vand.u32 %v112, 4294901760
    %114 = vmatmul.mubr.f32.gmra.mrb[0].mxu0 %v113
    %v115 = vpop.f32.mrb[0].mxu0
    %v116 = vadd.f32 0.0, %v115
    %v117 = vpop.f32.mrb[0].mxu0
    %118 = vmatprep.mubr.f32.mxu0 0.0
    %v119 = vand.u32 %v40, 4294901760
    %v120 = vsub.f32 %v40, %v119
    %v121 = vand.u32 %v120, 4294901760
    %v122 = vsub.f32 %v120, %v121
    %v123 = vand.u32 %v122, 4294901760
    %124 = vmatmul.mubr.f32.gmra.mrb[0].mxu0 %v123
    %v125 = vpop.f32.mrb[0].mxu0
    %v126 = vadd.f32 0.0, %v125
    %v127 = vpop.f32.mrb[0].mxu0
    %128 = vdwg.mxu0
    %129 = vmatprep.subr.mxu0 0.0
    %v130 = vand.u32 %v31, 4294901760
    %v131 = vsub.f32 %v31, %v130
    %v132 = vand.u32 %v131, 4294901760
    %v133 = vsub.f32 %v131, %v132
    %v134 = vand.u32 %v133, 4294901760
    %135 = vmatpush1.msra.mxu0 %v134
    %136 = vmatprep.subr.mxu0 0.0
    %v137 = vand.u32 %v34, 4294901760
    %v138 = vsub.f32 %v34, %v137
    %v139 = vand.u32 %v138, 4294901760
    %v140 = vsub.f32 %v138, %v139
    %v141 = vand.u32 %v140, 4294901760
    %142 = vmatpush1.msra.mxu0 %v141
    %143 = vmatprep.subr.mxu0 0.0
    %144 = vmatpush1.msra.mxu0 0.0
    %145 = vmatprep.subr.mxu0 0.0
    %146 = vmatpush1.msra.mxu0 0.0
    %147 = vmatprep.subr.mxu0 0.0
    %148 = vmatpush1.msra.mxu0 0.0
    %149 = vmatprep.subr.mxu0 0.0
    %150 = vmatpush1.msra.mxu0 0.0
    %151 = vmatprep.subr.mxu0 0.0
    %152 = vmatpush1.msra.mxu0 0.0
    %153 = vmatprep.subr.mxu0 0.0
    %154 = vmatpush1.msra.mxu0 0.0
    %155 = vmatprep.subr.mxu0 0.0
    %156 = vmatpush1.msra.mxu0 0.0
    %157 = vmatprep.subr.mxu0 0.0
    %158 = vmatpush1.msra.mxu0 0.0
    %159 = vmatprep.subr.mxu0 0.0
    %160 = vmatpush1.msra.mxu0 0.0
    %161 = vmatprep.subr.mxu0 0.0
    %162 = vmatpush1.msra.mxu0 0.0
    %163 = vmatprep.subr.mxu0 0.0
    %164 = vmatpush1.msra.mxu0 0.0
    %165 = vmatprep.subr.mxu0 0.0
    %166 = vmatpush1.msra.mxu0 0.0
    %167 = vmatprep.subr.mxu0 0.0
    %168 = vmatpush1.msra.mxu0 0.0
    %169 = vmatprep.subr.mxu0 0.0
    %170 = vmatpush1.msra.mxu0 0.0
    %171 = vmatprep.subr.mxu0 0.0
    %172 = vmatpush1.msra.mxu0 0.0
    %173 = vmatprep.subr.mxu0 0.0
    %174 = vmatpush1.msra.mxu0 0.0
    %175 = vmatprep.subr.mxu0 0.0
    %176 = vmatpush1.msra.mxu0 0.0
    %177 = vmatprep.subr.mxu0 0.0
    %178 = vmatpush1.msra.mxu0 0.0
    %179 = vmatprep.subr.mxu0 0.0
    %180 = vmatpush1.msra.mxu0 0.0
    %181 = vmatprep.subr.mxu0 0.0
    %182 = vmatpush1.msra.mxu0 0.0
    %183 = vmatprep.subr.mxu0 0.0
    %184 = vmatpush1.msra.mxu0 0.0
    %185 = vmatprep.subr.mxu0 0.0
    %186 = vmatpush1.msra.mxu0 0.0
    %187 = vmatprep.subr.mxu0 0.0
    %188 = vmatpush1.msra.mxu0 0.0
    %189 = vmatprep.subr.mxu0 0.0
    %190 = vmatpush1.msra.mxu0 0.0
    %191 = vmatprep.subr.mxu0 0.0
    %192 = vmatpush1.msra.mxu0 0.0
    %193 = vmatprep.subr.mxu0 0.0
    %194 = vmatpush1.msra.mxu0 0.0
    %195 = vmatprep.subr.mxu0 0.0
    %196 = vmatpush1.msra.mxu0 0.0
    %197 = vmatprep.subr.mxu0 0.0
    %198 = vmatpush1.msra.mxu0 0.0
    %199 = vmatprep.subr.mxu0 0.0
    %200 = vmatpush1.msra.mxu0 0.0
    %201 = vmatprep.subr.mxu0 0.0
    %202 = vmatpush1.msra.mxu0 0.0
    %203 = vmatprep.mubr.f32.mxu0 0.0
    %v204 = vand.u32 %v37, 4294901760
    %205 = vmatmul.mubr.f32.gmra.mrb[0].mxu0 %v204
    %v206 = vpop.f32.mrb[0].mxu0
    %v207 = vadd.f32 %v116, %v206
    %v208 = vpop.f32.mrb[0].mxu0
    %209 = vmatprep.mubr.f32.mxu0 0.0
    %v210 = vand.u32 %v40, 4294901760
    %211 = vmatmul.mubr.f32.gmra.mrb[0].mxu0 %v210
    %v212 = vpop.f32.mrb[0].mxu0
    %v213 = vadd.f32 %v126, %v212
    %v214 = vpop.f32.mrb[0].mxu0
    %215 = vdwg.mxu0
    %216 = vmatprep.subr.mxu0 0.0
    %v217 = vand.u32 %v31, 4294901760
    %v218 = vsub.f32 %v31, %v217
    %219 = vmatpush1.msra.mxu0 %v218
    %220 = vmatprep.subr.mxu0 0.0
    %v221 = vand.u32 %v34, 4294901760
    %v222 = vsub.f32 %v34, %v221
    %223 = vmatpush1.msra.mxu0 %v222
    %224 = vmatprep.subr.mxu0 0.0
    %225 = vmatpush1.msra.mxu0 0.0
    %226 = vmatprep.subr.mxu0 0.0
    %227 = vmatpush1.msra.mxu0 0.0
    %228 = vmatprep.subr.mxu0 0.0
    %229 = vmatpush1.msra.mxu0 0.0
    %230 = vmatprep.subr.mxu0 0.0
    %231 = vmatpush1.msra.mxu0 0.0
    %232 = vmatprep.subr.mxu0 0.0
    %233 = vmatpush1.msra.mxu0 0.0
    %234 = vmatprep.subr.mxu0 0.0
    %235 = vmatpush1.msra.mxu0 0.0
    %236 = vmatprep.subr.mxu0 0.0
    %237 = vmatpush1.msra.mxu0 0.0
    %238 = vmatprep.subr.mxu0 0.0
    %239 = vmatpush1.msra.mxu0 0.0
    %240 = vmatprep.subr.mxu0 0.0
    %241 = vmatpush1.msra.mxu0 0.0
    %242 = vmatprep.subr.mxu0 0.0
    %243 = vmatpush1.msra.mxu0 0.0
    %244 = vmatprep.subr.mxu0 0.0
    %245 = vmatpush1.msra.mxu0 0.0
    %246 = vmatprep.subr.mxu0 0.0
    %247 = vmatpush1.msra.mxu0 0.0
    %248 = vmatprep.subr.mxu0 0.0
    %249 = vmatpush1.msra.mxu0 0.0
    %250 = vmatprep.subr.mxu0 0.0
    %251 = vmatpush1.msra.mxu0 0.0
    %252 = vmatprep.subr.mxu0 0.0
    %253 = vmatpush1.msra.mxu0 0.0
    %254 = vmatprep.subr.mxu0 0.0
    %255 = vmatpush1.msra.mxu0 0.0
    %256 = vmatprep.subr.mxu0 0.0
    %257 = vmatpush1.msra.mxu0 0.0
    %258 = vmatprep.subr.mxu0 0.0
    %259 = vmatpush1.msra.mxu0 0.0
    %260 = vmatprep.subr.mxu0 0.0
    %261 = vmatpush1.msra.mxu0 0.0
    %262 = vmatprep.subr.mxu0 0.0
    %263 = vmatpush1.msra.mxu0 0.0
    %264 = vmatprep.subr.mxu0 0.0
    %265 = vmatpush1.msra.mxu0 0.0
    %266 = vmatprep.subr.mxu0 0.0
    %267 = vmatpush1.msra.mxu0 0.0
    %268 = vmatprep.subr.mxu0 0.0
    %269 = vmatpush1.msra.mxu0 0.0
    %270 = vmatprep.subr.mxu0 0.0
    %271 = vmatpush1.msra.mxu0 0.0
    %272 = vmatprep.subr.mxu0 0.0
    %273 = vmatpush1.msra.mxu0 0.0
    %274 = vmatprep.subr.mxu0 0.0
    %275 = vmatpush1.msra.mxu0 0.0
    %276 = vmatprep.subr.mxu0 0.0
    %277 = vmatpush1.msra.mxu0 0.0
    %278 = vmatprep.subr.mxu0 0.0
    %279 = vmatpush1.msra.mxu0 0.0
    %280 = vmatprep.subr.mxu0 0.0
    %281 = vmatpush1.msra.mxu0 0.0
    %282 = vmatprep.subr.mxu0 0.0
    %283 = vmatpush1.msra.mxu0 0.0
    %284 = vmatprep.mubr.f32.mxu0 0.0
    %v285 = vand.u32 %v37, 4294901760
    %v286 = vsub.f32 %v37, %v285
    %287 = vmatmul.mubr.f32.gmra.mrb[0].mxu0 %v286
    %v288 = vpop.f32.mrb[0].mxu0
    %v289 = vadd.f32 %v207, %v288
    %v290 = vpop.f32.mrb[0].mxu0
    %291 = vmatprep.mubr.f32.mxu0 0.0
    %v292 = vand.u32 %v40, 4294901760
    %v293 = vsub.f32 %v40, %v292
    %294 = vmatmul.mubr.f32.gmra.mrb[0].mxu0 %v293
    %v295 = vpop.f32.mrb[0].mxu0
    %v296 = vadd.f32 %v213, %v295
    %v297 = vpop.f32.mrb[0].mxu0
    %298 = vdwg.mxu0
    %299 = vmatprep.subr.mxu0 0.0
    %v300 = vand.u32 %v31, 4294901760
    %301 = vmatpush1.msra.mxu0 %v300
    %302 = vmatprep.subr.mxu0 0.0
    %v303 = vand.u32 %v34, 4294901760
    %304 = vmatpush1.msra.mxu0 %v303
    %305 = vmatprep.subr.mxu0 0.0
    %306 = vmatpush1.msra.mxu0 0.0
    %307 = vmatprep.subr.mxu0 0.0
    %308 = vmatpush1.msra.mxu0 0.0
    %309 = vmatprep.subr.mxu0 0.0
    %310 = vmatpush1.msra.mxu0 0.0
    %311 = vmatprep.subr.mxu0 0.0
    %312 = vmatpush1.msra.mxu0 0.0
    %313 = vmatprep.subr.mxu0 0.0
    %314 = vmatpush1.msra.mxu0 0.0
    %315 = vmatprep.subr.mxu0 0.0
    %316 = vmatpush1.msra.mxu0 0.0
    %317 = vmatprep.subr.mxu0 0.0
    %318 = vmatpush1.msra.mxu0 0.0
    %319 = vmatprep.subr.mxu0 0.0
    %320 = vmatpush1.msra.mxu0 0.0
    %321 = vmatprep.subr.mxu0 0.0
    %322 = vmatpush1.msra.mxu0 0.0
    %323 = vmatprep.subr.mxu0 0.0
    %324 = vmatpush1.msra.mxu0 0.0
    %325 = vmatprep.subr.mxu0 0.0
    %326 = vmatpush1.msra.mxu0 0.0
    %327 = vmatprep.subr.mxu0 0.0
    %328 = vmatpush1.msra.mxu0 0.0
    %329 = vmatprep.subr.mxu0 0.0
    %330 = vmatpush1.msra.mxu0 0.0
    %331 = vmatprep.subr.mxu0 0.0
    %332 = vmatpush1.msra.mxu0 0.0
    %333 = vmatprep.subr.mxu0 0.0
    %334 = vmatpush1.msra.mxu0 0.0
    %335 = vmatprep.subr.mxu0 0.0
    %336 = vmatpush1.msra.mxu0 0.0
    %337 = vmatprep.subr.mxu0 0.0
    %338 = vmatpush1.msra.mxu0 0.0
    %339 = vmatprep.subr.mxu0 0.0
    %340 = vmatpush1.msra.mxu0 0.0
    %341 = vmatprep.subr.mxu0 0.0
    %342 = vmatpush1.msra.mxu0 0.0
    %343 = vmatprep.subr.mxu0 0.0
    %344 = vmatpush1.msra.mxu0 0.0
    %345 = vmatprep.subr.mxu0 0.0
    %346 = vmatpush1.msra.mxu0 0.0
    %347 = vmatprep.subr.mxu0 0.0
    %348 = vmatpush1.msra.mxu0 0.0
    %349 = vmatprep.subr.mxu0 0.0
    %350 = vmatpush1.msra.mxu0 0.0
    %351 = vmatprep.subr.mxu0 0.0
    %352 = vmatpush1.msra.mxu0 0.0
    %353 = vmatprep.subr.mxu0 0.0
    %354 = vmatpush1.msra.mxu0 0.0
    %355 = vmatprep.subr.mxu0 0.0
    %356 = vmatpush1.msra.mxu0 0.0
    %357 = vmatprep.subr.mxu0 0.0
    %358 = vmatpush1.msra.mxu0 0.0
    %359 = vmatprep.subr.mxu0 0.0
    %360 = vmatpush1.msra.mxu0 0.0
    %361 = vmatprep.subr.mxu0 0.0
    %362 = vmatpush1.msra.mxu0 0.0
    %363 = vmatprep.subr.mxu0 0.0
    %364 = vmatpush1.msra.mxu0 0.0
    %365 = vmatprep.mubr.f32.mxu0 0.0
    %v366 = vand.u32 %v37, 4294901760
    %v367 = vsub.f32 %v37, %v366
    %v368 = vand.u32 %v367, 4294901760
    %369 = vmatmul.mubr.f32.gmra.mrb[0].mxu0 %v368
    %v370 = vpop.f32.mrb[0].mxu0
    %v371 = vadd.f32 %v289, %v370
    %v372 = vpop.f32.mrb[0].mxu0
    %373 = vmatprep.mubr.f32.mxu0 0.0
    %v374 = vand.u32 %v40, 4294901760
    %v375 = vsub.f32 %v40, %v374
    %v376 = vand.u32 %v375, 4294901760
    %377 = vmatmul.mubr.f32.gmra.mrb[0].mxu0 %v376
    %v378 = vpop.f32.mrb[0].mxu0
    %v379 = vadd.f32 %v296, %v378
    %v380 = vpop.f32.mrb[0].mxu0
    %381 = vdwg.mxu0
    %382 = vmatprep.subr.mxu0 0.0
    %v383 = vand.u32 %v31, 4294901760
    %v384 = vsub.f32 %v31, %v383
    %v385 = vand.u32 %v384, 4294901760
    %386 = vmatpush1.msra.mxu0 %v385
    %387 = vmatprep.subr.mxu0 0.0
    %v388 = vand.u32 %v34, 4294901760
    %v389 = vsub.f32 %v34, %v388
    %v390 = vand.u32 %v389, 4294901760
    %391 = vmatpush1.msra.mxu0 %v390
    %392 = vmatprep.subr.mxu0 0.0
    %393 = vmatpush1.msra.mxu0 0.0
    %394 = vmatprep.subr.mxu0 0.0
    %395 = vmatpush1.msra.mxu0 0.0
    %396 = vmatprep.subr.mxu0 0.0
    %397 = vmatpush1.msra.mxu0 0.0
    %398 = vmatprep.subr.mxu0 0.0
    %399 = vmatpush1.msra.mxu0 0.0
    %400 = vmatprep.subr.mxu0 0.0
    %401 = vmatpush1.msra.mxu0 0.0
    %402 = vmatprep.subr.mxu0 0.0
    %403 = vmatpush1.msra.mxu0 0.0
    %404 = vmatprep.subr.mxu0 0.0
    %405 = vmatpush1.msra.mxu0 0.0
    %406 = vmatprep.subr.mxu0 0.0
    %407 = vmatpush1.msra.mxu0 0.0
    %408 = vmatprep.subr.mxu0 0.0
    %409 = vmatpush1.msra.mxu0 0.0
    %410 = vmatprep.subr.mxu0 0.0
    %411 = vmatpush1.msra.mxu0 0.0
    %412 = vmatprep.subr.mxu0 0.0
    %413 = vmatpush1.msra.mxu0 0.0
    %414 = vmatprep.subr.mxu0 0.0
    %415 = vmatpush1.msra.mxu0 0.0
    %416 = vmatprep.subr.mxu0 0.0
    %417 = vmatpush1.msra.mxu0 0.0
    %418 = vmatprep.subr.mxu0 0.0
    %419 = vmatpush1.msra.mxu0 0.0
    %420 = vmatprep.subr.mxu0 0.0
    %421 = vmatpush1.msra.mxu0 0.0
    %422 = vmatprep.subr.mxu0 0.0
    %423 = vmatpush1.msra.mxu0 0.0
    %424 = vmatprep.subr.mxu0 0.0
    %425 = vmatpush1.msra.mxu0 0.0
    %426 = vmatprep.subr.mxu0 0.0
    %427 = vmatpush1.msra.mxu0 0.0
    %428 = vmatprep.subr.mxu0 0.0
    %429 = vmatpush1.msra.mxu0 0.0
    %430 = vmatprep.subr.mxu0 0.0
    %431 = vmatpush1.msra.mxu0 0.0
    %432 = vmatprep.subr.mxu0 0.0
    %433 = vmatpush1.msra.mxu0 0.0
    %434 = vmatprep.subr.mxu0 0.0
    %435 = vmatpush1.msra.mxu0 0.0
    %436 = vmatprep.subr.mxu0 0.0
    %437 = vmatpush1.msra.mxu0 0.0
    %438 = vmatprep.subr.mxu0 0.0
    %439 = vmatpush1.msra.mxu0 0.0
    %440 = vmatprep.subr.mxu0 0.0
    %441 = vmatpush1.msra.mxu0 0.0
    %442 = vmatprep.subr.mxu0 0.0
    %443 = vmatpush1.msra.mxu0 0.0
    %444 = vmatprep.subr.mxu0 0.0
    %445 = vmatpush1.msra.mxu0 0.0
    %446 = vmatprep.subr.mxu0 0.0
    %447 = vmatpush1.msra.mxu0 0.0
    %448 = vmatprep.subr.mxu0 0.0
    %449 = vmatpush1.msra.mxu0 0.0
    %450 = vmatprep.subr.mxu0 0.0
    %451 = vmatpush1.msra.mxu0 0.0
    %452 = vmatprep.mubr.f32.mxu0 0.0
    %v453 = vand.u32 %v37, 4294901760
    %454 = vmatmul.mubr.f32.gmra.mrb[0].mxu0 %v453
    %v455 = vpop.f32.mrb[0].mxu0
    %v456 = vadd.f32 %v371, %v455
    %v457 = vpop.f32.mrb[0].mxu0
    %458 = vmatprep.mubr.f32.mxu0 0.0
    %v459 = vand.u32 %v40, 4294901760
    %460 = vmatmul.mubr.f32.gmra.mrb[0].mxu0 %v459
    %v461 = vpop.f32.mrb[0].mxu0
    %v462 = vadd.f32 %v379, %v461
    %v463 = vpop.f32.mrb[0].mxu0
    %464 = vdwg.mxu0
    %465 = vmatprep.subr.mxu0 0.0
    %v466 = vand.u32 %v31, 4294901760
    %467 = vmatpush1.msra.mxu0 %v466
    %468 = vmatprep.subr.mxu0 0.0
    %v469 = vand.u32 %v34, 4294901760
    %470 = vmatpush1.msra.mxu0 %v469
    %471 = vmatprep.subr.mxu0 0.0
    %472 = vmatpush1.msra.mxu0 0.0
    %473 = vmatprep.subr.mxu0 0.0
    %474 = vmatpush1.msra.mxu0 0.0
    %475 = vmatprep.subr.mxu0 0.0
    %476 = vmatpush1.msra.mxu0 0.0
    %477 = vmatprep.subr.mxu0 0.0
    %478 = vmatpush1.msra.mxu0 0.0
    %479 = vmatprep.subr.mxu0 0.0
    %480 = vmatpush1.msra.mxu0 0.0
    %481 = vmatprep.subr.mxu0 0.0
    %482 = vmatpush1.msra.mxu0 0.0
    %483 = vmatprep.subr.mxu0 0.0
    %484 = vmatpush1.msra.mxu0 0.0
    %485 = vmatprep.subr.mxu0 0.0
    %486 = vmatpush1.msra.mxu0 0.0
    %487 = vmatprep.subr.mxu0 0.0
    %488 = vmatpush1.msra.mxu0 0.0
    %489 = vmatprep.subr.mxu0 0.0
    %490 = vmatpush1.msra.mxu0 0.0
    %491 = vmatprep.subr.mxu0 0.0
    %492 = vmatpush1.msra.mxu0 0.0
    %493 = vmatprep.subr.mxu0 0.0
    %494 = vmatpush1.msra.mxu0 0.0
    %495 = vmatprep.subr.mxu0 0.0
    %496 = vmatpush1.msra.mxu0 0.0
    %497 = vmatprep.subr.mxu0 0.0
    %498 = vmatpush1.msra.mxu0 0.0
    %499 = vmatprep.subr.mxu0 0.0
    %500 = vmatpush1.msra.mxu0 0.0
    %501 = vmatprep.subr.mxu0 0.0
    %502 = vmatpush1.msra.mxu0 0.0
    %503 = vmatprep.subr.mxu0 0.0
    %504 = vmatpush1.msra.mxu0 0.0
    %505 = vmatprep.subr.mxu0 0.0
    %506 = vmatpush1.msra.mxu0 0.0
    %507 = vmatprep.subr.mxu0 0.0
    %508 = vmatpush1.msra.mxu0 0.0
    %509 = vmatprep.subr.mxu0 0.0
    %510 = vmatpush1.msra.mxu0 0.0
    %511 = vmatprep.subr.mxu0 0.0
    %512 = vmatpush1.msra.mxu0 0.0
    %513 = vmatprep.subr.mxu0 0.0
    %514 = vmatpush1.msra.mxu0 0.0
    %515 = vmatprep.subr.mxu0 0.0
    %516 = vmatpush1.msra.mxu0 0.0
    %517 = vmatprep.subr.mxu0 0.0
    %518 = vmatpush1.msra.mxu0 0.0
    %519 = vmatprep.subr.mxu0 0.0
    %520 = vmatpush1.msra.mxu0 0.0
    %521 = vmatprep.subr.mxu0 0.0
    %522 = vmatpush1.msra.mxu0 0.0
    %523 = vmatprep.subr.mxu0 0.0
    %524 = vmatpush1.msra.mxu0 0.0
    %525 = vmatprep.subr.mxu0 0.0
    %526 = vmatpush1.msra.mxu0 0.0
    %527 = vmatprep.subr.mxu0 0.0
    %528 = vmatpush1.msra.mxu0 0.0
    %529 = vmatprep.subr.mxu0 0.0
    %530 = vmatpush1.msra.mxu0 0.0
    %531 = vmatprep.mubr.f32.mxu0 0.0
    %v532 = vand.u32 %v37, 4294901760
    %533 = vmatmul.mubr.f32.gmra.mrb[0].mxu0 %v532
    %v534 = vpop.f32.mrb[0].mxu0
    %v535 = vadd.f32 %v456, %v534
    %v536 = vpop.f32.mrb[0].mxu0
    %537 = vmatprep.mubr.f32.mxu0 0.0
    %v538 = vand.u32 %v40, 4294901760
    %539 = vmatmul.mubr.f32.gmra.mrb[0].mxu0 %v538
    %v540 = vpop.f32.mrb[0].mxu0
    %v541 = vadd.f32 %v462, %v540
    %v542 = vpop.f32.mrb[0].mxu0
    %543 = vdwg.mxu0
    %v544 = vmul.f32 %v535, 0.00048828125
    %v545 = vmul.f32 %v541, 0.00048828125
    %547 = vset.pattern.permute.xlu0 0
    %548 = vperm.xlu0 %547, %v544
    %v549 = vpop.permute.xlu0 %548
    %552 = vset.pattern.permute.xlu0 0
    %553 = vperm.xlu0 %552, %v545
    %v554 = vpop.permute.xlu0 %553
    %v556 = vsub.f32 %v15, %v549
    %v557 = vsub.f32 %v16, %v549
    %v558 = vsub.f32 %v17, %v554
    %v559 = vsub.f32 %v18, %v554
    %v560 = vmul.f32 %v556, %v556
    %v561 = vmul.f32 %v557, %v557
    %v562 = vmul.f32 %v558, %v558
    %v563 = vmul.f32 %v559, %v559
    %v564 = vadd.f32 %v560, %v561
    %565 = vadd.xlane.f32.xlu0 %v564
    %v566 = vpop.xlane.xlu0 %565
    %v567 = vadd.f32 %v562, %v563
    %568 = vadd.xlane.f32.xlu0 %v567
    %v569 = vpop.xlane.xlu0 %568
    %570 = vmatprep.subr.mxu0 0.0
    %v571 = vand.u32 %v566, 4294901760
    %572 = vmatpush1.msra.mxu0 %v571
    %573 = vmatprep.subr.mxu0 0.0
    %v574 = vand.u32 %v569, 4294901760
    %575 = vmatpush1.msra.mxu0 %v574
    %576 = vmatprep.subr.mxu0 0.0
    %577 = vmatpush1.msra.mxu0 0.0
    %578 = vmatprep.subr.mxu0 0.0
    %579 = vmatpush1.msra.mxu0 0.0
    %580 = vmatprep.subr.mxu0 0.0
    %581 = vmatpush1.msra.mxu0 0.0
    %582 = vmatprep.subr.mxu0 0.0
    %583 = vmatpush1.msra.mxu0 0.0
    %584 = vmatprep.subr.mxu0 0.0
    %585 = vmatpush1.msra.mxu0 0.0
    %586 = vmatprep.subr.mxu0 0.0
    %587 = vmatpush1.msra.mxu0 0.0
    %588 = vmatprep.subr.mxu0 0.0
    %589 = vmatpush1.msra.mxu0 0.0
    %590 = vmatprep.subr.mxu0 0.0
    %591 = vmatpush1.msra.mxu0 0.0
    %592 = vmatprep.subr.mxu0 0.0
    %593 = vmatpush1.msra.mxu0 0.0
    %594 = vmatprep.subr.mxu0 0.0
    %595 = vmatpush1.msra.mxu0 0.0
    %596 = vmatprep.subr.mxu0 0.0
    %597 = vmatpush1.msra.mxu0 0.0
    %598 = vmatprep.subr.mxu0 0.0
    %599 = vmatpush1.msra.mxu0 0.0
    %600 = vmatprep.subr.mxu0 0.0
    %601 = vmatpush1.msra.mxu0 0.0
    %602 = vmatprep.subr.mxu0 0.0
    %603 = vmatpush1.msra.mxu0 0.0
    %604 = vmatprep.subr.mxu0 0.0
    %605 = vmatpush1.msra.mxu0 0.0
    %606 = vmatprep.subr.mxu0 0.0
    %607 = vmatpush1.msra.mxu0 0.0
    %608 = vmatprep.subr.mxu0 0.0
    %609 = vmatpush1.msra.mxu0 0.0
    %610 = vmatprep.subr.mxu0 0.0
    %611 = vmatpush1.msra.mxu0 0.0
    %612 = vmatprep.subr.mxu0 0.0
    %613 = vmatpush1.msra.mxu0 0.0
    %614 = vmatprep.subr.mxu0 0.0
    %615 = vmatpush1.msra.mxu0 0.0
    %616 = vmatprep.subr.mxu0 0.0
    %617 = vmatpush1.msra.mxu0 0.0
    %618 = vmatprep.subr.mxu0 0.0
    %619 = vmatpush1.msra.mxu0 0.0
    %620 = vmatprep.subr.mxu0 0.0
    %621 = vmatpush1.msra.mxu0 0.0
    %622 = vmatprep.subr.mxu0 0.0
    %623 = vmatpush1.msra.mxu0 0.0
    %624 = vmatprep.subr.mxu0 0.0
    %625 = vmatpush1.msra.mxu0 0.0
    %626 = vmatprep.subr.mxu0 0.0
    %627 = vmatpush1.msra.mxu0 0.0
    %628 = vmatprep.subr.mxu0 0.0
    %629 = vmatpush1.msra.mxu0 0.0
    %630 = vmatprep.subr.mxu0 0.0
    %631 = vmatpush1.msra.mxu0 0.0
    %632 = vmatprep.subr.mxu0 0.0
    %633 = vmatpush1.msra.mxu0 0.0
    %634 = vmatprep.subr.mxu0 0.0
    %635 = vmatpush1.msra.mxu0 0.0
    %636 = vmatprep.mubr.f32.mxu0 0.0
    %v637 = vand.u32 %v37, 4294901760
    %v638 = vsub.f32 %v37, %v637
    %v639 = vand.u32 %v638, 4294901760
    %v640 = vsub.f32 %v638, %v639
    %v641 = vand.u32 %v640, 4294901760
    %642 = vmatmul.mubr.f32.gmra.mrb[0].mxu0 %v641
    %v643 = vpop.f32.mrb[0].mxu0
    %v644 = vadd.f32 0.0, %v643
    %v645 = vpop.f32.mrb[0].mxu0
    %646 = vmatprep.mubr.f32.mxu0 0.0
    %v647 = vand.u32 %v40, 4294901760
    %v648 = vsub.f32 %v40, %v647
    %v649 = vand.u32 %v648, 4294901760
    %v650 = vsub.f32 %v648, %v649
    %v651 = vand.u32 %v650, 4294901760
    %652 = vmatmul.mubr.f32.gmra.mrb[0].mxu0 %v651
    %v653 = vpop.f32.mrb[0].mxu0
    %v654 = vadd.f32 0.0, %v653
    %v655 = vpop.f32.mrb[0].mxu0
    %656 = vdwg.mxu0
    %657 = vmatprep.subr.mxu0 0.0
    %v658 = vand.u32 %v566, 4294901760
    %v659 = vsub.f32 %v566, %v658
    %v660 = vand.u32 %v659, 4294901760
    %v661 = vsub.f32 %v659, %v660
    %v662 = vand.u32 %v661, 4294901760
    %663 = vmatpush1.msra.mxu0 %v662
    %664 = vmatprep.subr.mxu0 0.0
    %v665 = vand.u32 %v569, 4294901760
    %v666 = vsub.f32 %v569, %v665
    %v667 = vand.u32 %v666, 4294901760
    %v668 = vsub.f32 %v666, %v667
    %v669 = vand.u32 %v668, 4294901760
    %670 = vmatpush1.msra.mxu0 %v669
    %671 = vmatprep.subr.mxu0 0.0
    %672 = vmatpush1.msra.mxu0 0.0
    %673 = vmatprep.subr.mxu0 0.0
    %674 = vmatpush1.msra.mxu0 0.0
    %675 = vmatprep.subr.mxu0 0.0
    %676 = vmatpush1.msra.mxu0 0.0
    %677 = vmatprep.subr.mxu0 0.0
    %678 = vmatpush1.msra.mxu0 0.0
    %679 = vmatprep.subr.mxu0 0.0
    %680 = vmatpush1.msra.mxu0 0.0
    %681 = vmatprep.subr.mxu0 0.0
    %682 = vmatpush1.msra.mxu0 0.0
    %683 = vmatprep.subr.mxu0 0.0
    %684 = vmatpush1.msra.mxu0 0.0
    %685 = vmatprep.subr.mxu0 0.0
    %686 = vmatpush1.msra.mxu0 0.0
    %687 = vmatprep.subr.mxu0 0.0
    %688 = vmatpush1.msra.mxu0 0.0
    %689 = vmatprep.subr.mxu0 0.0
    %690 = vmatpush1.msra.mxu0 0.0
    %691 = vmatprep.subr.mxu0 0.0
    %692 = vmatpush1.msra.mxu0 0.0
    %693 = vmatprep.subr.mxu0 0.0
    %694 = vmatpush1.msra.mxu0 0.0
    %695 = vmatprep.subr.mxu0 0.0
    %696 = vmatpush1.msra.mxu0 0.0
    %697 = vmatprep.subr.mxu0 0.0
    %698 = vmatpush1.msra.mxu0 0.0
    %699 = vmatprep.subr.mxu0 0.0
    %700 = vmatpush1.msra.mxu0 0.0
    %701 = vmatprep.subr.mxu0 0.0
    %702 = vmatpush1.msra.mxu0 0.0
    %703 = vmatprep.subr.mxu0 0.0
    %704 = vmatpush1.msra.mxu0 0.0
    %705 = vmatprep.subr.mxu0 0.0
    %706 = vmatpush1.msra.mxu0 0.0
    %707 = vmatprep.subr.mxu0 0.0
    %708 = vmatpush1.msra.mxu0 0.0
    %709 = vmatprep.subr.mxu0 0.0
    %710 = vmatpush1.msra.mxu0 0.0
    %711 = vmatprep.subr.mxu0 0.0
    %712 = vmatpush1.msra.mxu0 0.0
    %713 = vmatprep.subr.mxu0 0.0
    %714 = vmatpush1.msra.mxu0 0.0
    %715 = vmatprep.subr.mxu0 0.0
    %716 = vmatpush1.msra.mxu0 0.0
    %717 = vmatprep.subr.mxu0 0.0
    %718 = vmatpush1.msra.mxu0 0.0
    %719 = vmatprep.subr.mxu0 0.0
    %720 = vmatpush1.msra.mxu0 0.0
    %721 = vmatprep.subr.mxu0 0.0
    %722 = vmatpush1.msra.mxu0 0.0
    %723 = vmatprep.subr.mxu0 0.0
    %724 = vmatpush1.msra.mxu0 0.0
    %725 = vmatprep.subr.mxu0 0.0
    %726 = vmatpush1.msra.mxu0 0.0
    %727 = vmatprep.subr.mxu0 0.0
    %728 = vmatpush1.msra.mxu0 0.0
    %729 = vmatprep.subr.mxu0 0.0
    %730 = vmatpush1.msra.mxu0 0.0
    %731 = vmatprep.mubr.f32.mxu0 0.0
    %v732 = vand.u32 %v37, 4294901760
    %733 = vmatmul.mubr.f32.gmra.mrb[0].mxu0 %v732
    %v734 = vpop.f32.mrb[0].mxu0
    %v735 = vadd.f32 %v644, %v734
    %v736 = vpop.f32.mrb[0].mxu0
    %737 = vmatprep.mubr.f32.mxu0 0.0
    %v738 = vand.u32 %v40, 4294901760
    %739 = vmatmul.mubr.f32.gmra.mrb[0].mxu0 %v738
    %v740 = vpop.f32.mrb[0].mxu0
    %v741 = vadd.f32 %v654, %v740
    %v742 = vpop.f32.mrb[0].mxu0
    %743 = vdwg.mxu0
    %744 = vmatprep.subr.mxu0 0.0
    %v745 = vand.u32 %v566, 4294901760
    %v746 = vsub.f32 %v566, %v745
    %747 = vmatpush1.msra.mxu0 %v746
    %748 = vmatprep.subr.mxu0 0.0
    %v749 = vand.u32 %v569, 4294901760
    %v750 = vsub.f32 %v569, %v749
    %751 = vmatpush1.msra.mxu0 %v750
    %752 = vmatprep.subr.mxu0 0.0
    %753 = vmatpush1.msra.mxu0 0.0
    %754 = vmatprep.subr.mxu0 0.0
    %755 = vmatpush1.msra.mxu0 0.0
    %756 = vmatprep.subr.mxu0 0.0
    %757 = vmatpush1.msra.mxu0 0.0
    %758 = vmatprep.subr.mxu0 0.0
    %759 = vmatpush1.msra.mxu0 0.0
    %760 = vmatprep.subr.mxu0 0.0
    %761 = vmatpush1.msra.mxu0 0.0
    %762 = vmatprep.subr.mxu0 0.0
    %763 = vmatpush1.msra.mxu0 0.0
    %764 = vmatprep.subr.mxu0 0.0
    %765 = vmatpush1.msra.mxu0 0.0
    %766 = vmatprep.subr.mxu0 0.0
    %767 = vmatpush1.msra.mxu0 0.0
    %768 = vmatprep.subr.mxu0 0.0
    %769 = vmatpush1.msra.mxu0 0.0
    %770 = vmatprep.subr.mxu0 0.0
    %771 = vmatpush1.msra.mxu0 0.0
    %772 = vmatprep.subr.mxu0 0.0
    %773 = vmatpush1.msra.mxu0 0.0
    %774 = vmatprep.subr.mxu0 0.0
    %775 = vmatpush1.msra.mxu0 0.0
    %776 = vmatprep.subr.mxu0 0.0
    %777 = vmatpush1.msra.mxu0 0.0
    %778 = vmatprep.subr.mxu0 0.0
    %779 = vmatpush1.msra.mxu0 0.0
    %780 = vmatprep.subr.mxu0 0.0
    %781 = vmatpush1.msra.mxu0 0.0
    %782 = vmatprep.subr.mxu0 0.0
    %783 = vmatpush1.msra.mxu0 0.0
    %784 = vmatprep.subr.mxu0 0.0
    %785 = vmatpush1.msra.mxu0 0.0
    %786 = vmatprep.subr.mxu0 0.0
    %787 = vmatpush1.msra.mxu0 0.0
    %788 = vmatprep.subr.mxu0 0.0
    %789 = vmatpush1.msra.mxu0 0.0
    %790 = vmatprep.subr.mxu0 0.0
    %791 = vmatpush1.msra.mxu0 0.0
    %792 = vmatprep.subr.mxu0 0.0
    %793 = vmatpush1.msra.mxu0 0.0
    %794 = vmatprep.subr.mxu0 0.0
    %795 = vmatpush1.msra.mxu0 0.0
    %796 = vmatprep.subr.mxu0 0.0
    %797 = vmatpush1.msra.mxu0 0.0
    %798 = vmatprep.subr.mxu0 0.0
    %799 = vmatpush1.msra.mxu0 0.0
    %800 = vmatprep.subr.mxu0 0.0
    %801 = vmatpush1.msra.mxu0 0.0
    %802 = vmatprep.subr.mxu0 0.0
    %803 = vmatpush1.msra.mxu0 0.0
    %804 = vmatprep.subr.mxu0 0.0
    %805 = vmatpush1.msra.mxu0 0.0
    %806 = vmatprep.subr.mxu0 0.0
    %807 = vmatpush1.msra.mxu0 0.0
    %808 = vmatprep.subr.mxu0 0.0
    %809 = vmatpush1.msra.mxu0 0.0
    %810 = vmatprep.subr.mxu0 0.0
    %811 = vmatpush1.msra.mxu0 0.0
    %812 = vmatprep.mubr.f32.mxu0 0.0
    %v813 = vand.u32 %v37, 4294901760
    %v814 = vsub.f32 %v37, %v813
    %815 = vmatmul.mubr.f32.gmra.mrb[0].mxu0 %v814
    %v816 = vpop.f32.mrb[0].mxu0
    %v817 = vadd.f32 %v735, %v816
    %v818 = vpop.f32.mrb[0].mxu0
    %819 = vmatprep.mubr.f32.mxu0 0.0
    %v820 = vand.u32 %v40, 4294901760
    %v821 = vsub.f32 %v40, %v820
    %822 = vmatmul.mubr.f32.gmra.mrb[0].mxu0 %v821
    %v823 = vpop.f32.mrb[0].mxu0
    %v824 = vadd.f32 %v741, %v823
    %v825 = vpop.f32.mrb[0].mxu0
    %826 = vdwg.mxu0
    %827 = vmatprep.subr.mxu0 0.0
    %v828 = vand.u32 %v566, 4294901760
    %829 = vmatpush1.msra.mxu0 %v828
    %830 = vmatprep.subr.mxu0 0.0
    %v831 = vand.u32 %v569, 4294901760
    %832 = vmatpush1.msra.mxu0 %v831
    %833 = vmatprep.subr.mxu0 0.0
    %834 = vmatpush1.msra.mxu0 0.0
    %835 = vmatprep.subr.mxu0 0.0
    %836 = vmatpush1.msra.mxu0 0.0
    %837 = vmatprep.subr.mxu0 0.0
    %838 = vmatpush1.msra.mxu0 0.0
    %839 = vmatprep.subr.mxu0 0.0
    %840 = vmatpush1.msra.mxu0 0.0
    %841 = vmatprep.subr.mxu0 0.0
    %842 = vmatpush1.msra.mxu0 0.0
    %843 = vmatprep.subr.mxu0 0.0
    %844 = vmatpush1.msra.mxu0 0.0
    %845 = vmatprep.subr.mxu0 0.0
    %846 = vmatpush1.msra.mxu0 0.0
    %847 = vmatprep.subr.mxu0 0.0
    %848 = vmatpush1.msra.mxu0 0.0
    %849 = vmatprep.subr.mxu0 0.0
    %850 = vmatpush1.msra.mxu0 0.0
    %851 = vmatprep.subr.mxu0 0.0
    %852 = vmatpush1.msra.mxu0 0.0
    %853 = vmatprep.subr.mxu0 0.0
    %854 = vmatpush1.msra.mxu0 0.0
    %855 = vmatprep.subr.mxu0 0.0
    %856 = vmatpush1.msra.mxu0 0.0
    %857 = vmatprep.subr.mxu0 0.0
    %858 = vmatpush1.msra.mxu0 0.0
    %859 = vmatprep.subr.mxu0 0.0
    %860 = vmatpush1.msra.mxu0 0.0
    %861 = vmatprep.subr.mxu0 0.0
    %862 = vmatpush1.msra.mxu0 0.0
    %863 = vmatprep.subr.mxu0 0.0
    %864 = vmatpush1.msra.mxu0 0.0
    %865 = vmatprep.subr.mxu0 0.0
    %866 = vmatpush1.msra.mxu0 0.0
    %867 = vmatprep.subr.mxu0 0.0
    %868 = vmatpush1.msra.mxu0 0.0
    %869 = vmatprep.subr.mxu0 0.0
    %870 = vmatpush1.msra.mxu0 0.0
    %871 = vmatprep.subr.mxu0 0.0
    %872 = vmatpush1.msra.mxu0 0.0
    %873 = vmatprep.subr.mxu0 0.0
    %874 = vmatpush1.msra.mxu0 0.0
    %875 = vmatprep.subr.mxu0 0.0
    %876 = vmatpush1.msra.mxu0 0.0
    %877 = vmatprep.subr.mxu0 0.0
    %878 = vmatpush1.msra.mxu0 0.0
    %879 = vmatprep.subr.mxu0 0.0
    %880 = vmatpush1.msra.mxu0 0.0
    %881 = vmatprep.subr.mxu0 0.0
    %882 = vmatpush1.msra.mxu0 0.0
    %883 = vmatprep.subr.mxu0 0.0
    %884 = vmatpush1.msra.mxu0 0.0
    %885 = vmatprep.subr.mxu0 0.0
    %886 = vmatpush1.msra.mxu0 0.0
    %887 = vmatprep.subr.mxu0 0.0
    %888 = vmatpush1.msra.mxu0 0.0
    %889 = vmatprep.subr.mxu0 0.0
    %890 = vmatpush1.msra.mxu0 0.0
    %891 = vmatprep.subr.mxu0 0.0
    %892 = vmatpush1.msra.mxu0 0.0
    %893 = vmatprep.mubr.f32.mxu0 0.0
    %v894 = vand.u32 %v37, 4294901760
    %v895 = vsub.f32 %v37, %v894
    %v896 = vand.u32 %v895, 4294901760
    %897 = vmatmul.mubr.f32.gmra.mrb[0].mxu0 %v896
    %v898 = vpop.f32.mrb[0].mxu0
    %v899 = vadd.f32 %v817, %v898
    %v900 = vpop.f32.mrb[0].mxu0
    %901 = vmatprep.mubr.f32.mxu0 0.0
    %v902 = vand.u32 %v40, 4294901760
    %v903 = vsub.f32 %v40, %v902
    %v904 = vand.u32 %v903, 4294901760
    %905 = vmatmul.mubr.f32.gmra.mrb[0].mxu0 %v904
    %v906 = vpop.f32.mrb[0].mxu0
    %v907 = vadd.f32 %v824, %v906
    %v908 = vpop.f32.mrb[0].mxu0
    %909 = vdwg.mxu0
    %910 = vmatprep.subr.mxu0 0.0
    %v911 = vand.u32 %v566, 4294901760
    %v912 = vsub.f32 %v566, %v911
    %v913 = vand.u32 %v912, 4294901760
    %914 = vmatpush1.msra.mxu0 %v913
    %915 = vmatprep.subr.mxu0 0.0
    %v916 = vand.u32 %v569, 4294901760
    %v917 = vsub.f32 %v569, %v916
    %v918 = vand.u32 %v917, 4294901760
    %919 = vmatpush1.msra.mxu0 %v918
    %920 = vmatprep.subr.mxu0 0.0
    %921 = vmatpush1.msra.mxu0 0.0
    %922 = vmatprep.subr.mxu0 0.0
    %923 = vmatpush1.msra.mxu0 0.0
    %924 = vmatprep.subr.mxu0 0.0
    %925 = vmatpush1.msra.mxu0 0.0
    %926 = vmatprep.subr.mxu0 0.0
    %927 = vmatpush1.msra.mxu0 0.0
    %928 = vmatprep.subr.mxu0 0.0
    %929 = vmatpush1.msra.mxu0 0.0
    %930 = vmatprep.subr.mxu0 0.0
    %931 = vmatpush1.msra.mxu0 0.0
    %932 = vmatprep.subr.mxu0 0.0
    %933 = vmatpush1.msra.mxu0 0.0
    %934 = vmatprep.subr.mxu0 0.0
    %935 = vmatpush1.msra.mxu0 0.0
    %936 = vmatprep.subr.mxu0 0.0
    %937 = vmatpush1.msra.mxu0 0.0
    %938 = vmatprep.subr.mxu0 0.0
    %939 = vmatpush1.msra.mxu0 0.0
    %940 = vmatprep.subr.mxu0 0.0
    %941 = vmatpush1.msra.mxu0 0.0
    %942 = vmatprep.subr.mxu0 0.0
    %943 = vmatpush1.msra.mxu0 0.0
    %944 = vmatprep.subr.mxu0 0.0
    %945 = vmatpush1.msra.mxu0 0.0
    %946 = vmatprep.subr.mxu0 0.0
    %947 = vmatpush1.msra.mxu0 0.0
    %948 = vmatprep.subr.mxu0 0.0
    %949 = vmatpush1.msra.mxu0 0.0
    %950 = vmatprep.subr.mxu0 0.0
    %951 = vmatpush1.msra.mxu0 0.0
    %952 = vmatprep.subr.mxu0 0.0
    %953 = vmatpush1.msra.mxu0 0.0
    %954 = vmatprep.subr.mxu0 0.0
    %955 = vmatpush1.msra.mxu0 0.0
    %956 = vmatprep.subr.mxu0 0.0
    %957 = vmatpush1.msra.mxu0 0.0
    %958 = vmatprep.subr.mxu0 0.0
    %959 = vmatpush1.msra.mxu0 0.0
    %960 = vmatprep.subr.mxu0 0.0
    %961 = vmatpush1.msra.mxu0 0.0
    %962 = vmatprep.subr.mxu0 0.0
    %963 = vmatpush1.msra.mxu0 0.0
    %964 = vmatprep.subr.mxu0 0.0
    %965 = vmatpush1.msra.mxu0 0.0
    %966 = vmatprep.subr.mxu0 0.0
    %967 = vmatpush1.msra.mxu0 0.0
    %968 = vmatprep.subr.mxu0 0.0
    %969 = vmatpush1.msra.mxu0 0.0
    %970 = vmatprep.subr.mxu0 0.0
    %971 = vmatpush1.msra.mxu0 0.0
    %972 = vmatprep.subr.mxu0 0.0
    %973 = vmatpush1.msra.mxu0 0.0
    %974 = vmatprep.subr.mxu0 0.0
    %975 = vmatpush1.msra.mxu0 0.0
    %976 = vmatprep.subr.mxu0 0.0
    %977 = vmatpush1.msra.mxu0 0.0
    %978 = vmatprep.subr.mxu0 0.0
    %979 = vmatpush1.msra.mxu0 0.0
    %980 = vmatprep.mubr.f32.mxu0 0.0
    %v981 = vand.u32 %v37, 4294901760
    %982 = vmatmul.mubr.f32.gmra.mrb[0].mxu0 %v981
    %v983 = vpop.f32.mrb[0].mxu0
    %v984 = vadd.f32 %v899, %v983
    %v985 = vpop.f32.mrb[0].mxu0
    %986 = vmatprep.mubr.f32.mxu0 0.0
    %v987 = vand.u32 %v40, 4294901760
    %988 = vmatmul.mubr.f32.gmra.mrb[0].mxu0 %v987
    %v989 = vpop.f32.mrb[0].mxu0
    %v990 = vadd.f32 %v907, %v989
    %v991 = vpop.f32.mrb[0].mxu0
    %992 = vdwg.mxu0
    %993 = vmatprep.subr.mxu0 0.0
    %v994 = vand.u32 %v566, 4294901760
    %995 = vmatpush1.msra.mxu0 %v994
    %996 = vmatprep.subr.mxu0 0.0
    %v997 = vand.u32 %v569, 4294901760
    %998 = vmatpush1.msra.mxu0 %v997
    %999 = vmatprep.subr.mxu0 0.0
    %1000 = vmatpush1.msra.mxu0 0.0
    %1001 = vmatprep.subr.mxu0 0.0
    %1002 = vmatpush1.msra.mxu0 0.0
    %1003 = vmatprep.subr.mxu0 0.0
    %1004 = vmatpush1.msra.mxu0 0.0
    %1005 = vmatprep.subr.mxu0 0.0
    %1006 = vmatpush1.msra.mxu0 0.0
    %1007 = vmatprep.subr.mxu0 0.0
    %1008 = vmatpush1.msra.mxu0 0.0
    %1009 = vmatprep.subr.mxu0 0.0
    %1010 = vmatpush1.msra.mxu0 0.0
    %1011 = vmatprep.subr.mxu0 0.0
    %1012 = vmatpush1.msra.mxu0 0.0
    %1013 = vmatprep.subr.mxu0 0.0
    %1014 = vmatpush1.msra.mxu0 0.0
    %1015 = vmatprep.subr.mxu0 0.0
    %1016 = vmatpush1.msra.mxu0 0.0
    %1017 = vmatprep.subr.mxu0 0.0
    %1018 = vmatpush1.msra.mxu0 0.0
    %1019 = vmatprep.subr.mxu0 0.0
    %1020 = vmatpush1.msra.mxu0 0.0
    %1021 = vmatprep.subr.mxu0 0.0
    %1022 = vmatpush1.msra.mxu0 0.0
    %1023 = vmatprep.subr.mxu0 0.0
    %1024 = vmatpush1.msra.mxu0 0.0
    %1025 = vmatprep.subr.mxu0 0.0
    %1026 = vmatpush1.msra.mxu0 0.0
    %1027 = vmatprep.subr.mxu0 0.0
    %1028 = vmatpush1.msra.mxu0 0.0
    %1029 = vmatprep.subr.mxu0 0.0
    %1030 = vmatpush1.msra.mxu0 0.0
    %1031 = vmatprep.subr.mxu0 0.0
    %1032 = vmatpush1.msra.mxu0 0.0
    %1033 = vmatprep.subr.mxu0 0.0
    %1034 = vmatpush1.msra.mxu0 0.0
    %1035 = vmatprep.subr.mxu0 0.0
    %1036 = vmatpush1.msra.mxu0 0.0
    %1037 = vmatprep.subr.mxu0 0.0
    %1038 = vmatpush1.msra.mxu0 0.0
    %1039 = vmatprep.subr.mxu0 0.0
    %1040 = vmatpush1.msra.mxu0 0.0
    %1041 = vmatprep.subr.mxu0 0.0
    %1042 = vmatpush1.msra.mxu0 0.0
    %1043 = vmatprep.subr.mxu0 0.0
    %1044 = vmatpush1.msra.mxu0 0.0
    %1045 = vmatprep.subr.mxu0 0.0
    %1046 = vmatpush1.msra.mxu0 0.0
    %1047 = vmatprep.subr.mxu0 0.0
    %1048 = vmatpush1.msra.mxu0 0.0
    %1049 = vmatprep.subr.mxu0 0.0
    %1050 = vmatpush1.msra.mxu0 0.0
    %1051 = vmatprep.subr.mxu0 0.0
    %1052 = vmatpush1.msra.mxu0 0.0
    %1053 = vmatprep.subr.mxu0 0.0
    %1054 = vmatpush1.msra.mxu0 0.0
    %1055 = vmatprep.subr.mxu0 0.0
    %1056 = vmatpush1.msra.mxu0 0.0
    %1057 = vmatprep.subr.mxu0 0.0
    %1058 = vmatpush1.msra.mxu0 0.0
    %1059 = vmatprep.mubr.f32.mxu0 0.0
    %v1060 = vand.u32 %v37, 4294901760
    %1061 = vmatmul.mubr.f32.gmra.mrb[0].mxu0 %v1060
    %v1062 = vpop.f32.mrb[0].mxu0
    %v1063 = vadd.f32 %v984, %v1062
    %v1064 = vpop.f32.mrb[0].mxu0
    %1065 = vmatprep.mubr.f32.mxu0 0.0
    %v1066 = vand.u32 %v40, 4294901760
    %1067 = vmatmul.mubr.f32.gmra.mrb[0].mxu0 %v1066
    %v1068 = vpop.f32.mrb[0].mxu0
    %v1069 = vadd.f32 %v990, %v1068
    %v1070 = vpop.f32.mrb[0].mxu0
    %1071 = vdwg.mxu0
    %v1072 = vmul.f32 %v1063, 0.0004885198
    %v1073 = vmul.f32 %v1069, 0.0004885198
    %v1074 = vadd.f32 %v1072, 1e-05
    %v1075 = vadd.f32 %v1073, 1e-05
    %v1076 = vrsqrt.pop %v1074
    %v1077 = vrsqrt.pop %v1075
    %v1078 = vmul.f32 %v22, %v1076
    %v1079 = vmul.f32 %v23, %v1077
    %1081 = vset.pattern.permute.xlu0 0
    %1082 = vperm.xlu0 %1081, %v19
    %v1083 = vpop.permute.xlu0 %1082
    %1086 = vset.pattern.permute.xlu0 0
    %1087 = vperm.xlu0 %1086, %v20
    %v1088 = vpop.permute.xlu0 %1087
    %v1090 = vmul.f32 %v15, %v1083
    %v1091 = vmul.f32 %v16, %v1083
    %v1092 = vmul.f32 %v17, %v1088
    %v1093 = vmul.f32 %v18, %v1088
    %v1094 = vmul.f32 %v1090, 0.5
    %v1095 = vmul.f32 %v1091, 0.5
    %v1096 = vmul.f32 %v1092, 0.5
    %v1097 = vmul.f32 %v1093, 0.5
    %v1098 = vtanh.pop %v1094
    %v1099 = vtanh.pop %v1095
    %v1100 = vtanh.pop %v1096
    %v1101 = vtanh.pop %v1097
    %v1102 = vadd.f32 %v1098, 1.0
    %v1103 = vadd.f32 %v1099, 1.0
    %v1104 = vadd.f32 %v1100, 1.0
    %v1105 = vadd.f32 %v1101, 1.0
    %v1106 = vmul.f32 %v1102, 0.5
    %v1107 = vmul.f32 %v1103, 0.5
    %v1108 = vmul.f32 %v1104, 0.5
    %v1109 = vmul.f32 %v1105, 0.5
    %v1110 = vmul.f32 %v15, %v1106
    %v1111 = vmul.f32 %v16, %v1107
    %v1112 = vmul.f32 %v17, %v1108
    %v1113 = vmul.f32 %v18, %v1109
    %1115 = vset.pattern.permute.xlu0 0
    %1116 = vperm.xlu0 %1115, %v1078
    %v1117 = vpop.permute.xlu0 %1116
    %1120 = vset.pattern.permute.xlu0 0
    %1121 = vperm.xlu0 %1120, %v1079
    %v1122 = vpop.permute.xlu0 %1121
    %v1124 = vmul.f32 %v1110, %v1117
    %v1125 = vmul.f32 %v1111, %v1117
    %v1126 = vmul.f32 %v1112, %v1122
    %v1127 = vmul.f32 %v1113, %v1122
    %1129 = vset.pattern.permute.xlu0 0
    %1130 = vperm.xlu0 %1129, %v25
    %v1131 = vpop.permute.xlu0 %1130
    %1134 = vset.pattern.permute.xlu0 0
    %1135 = vperm.xlu0 %1134, %v26
    %v1136 = vpop.permute.xlu0 %1135
    %v1138 = vadd.f32 %v1124, %v1131
    %v1139 = vadd.f32 %v1125, %v1131
    %v1140 = vadd.f32 %v1126, %v1136
    %v1141 = vadd.f32 %v1127, %v1136
    %1142 = vst [vmem:[#allocation2] sm:$0xff] %v1138
    %1143 = vst [vmem:[#allocation2 + $0x8] sm:$0xff] %v1139
    %1144 = vst [vmem:[#allocation2 + $0x10] sm:$0xff] %v1140
    %1145 = vst [vmem:[#allocation2 + $0x18] sm:$0xff] %v1141
    // Predicated region
    $region14: #{tpu_custom_call.1} parent=1 // pred_check
      _
    $region15: #{tpu_custom_call.1} parent=1 // pred_check_branch
      %1147 = sbr.rel (0) target = $region17
    $region16: #{tpu_custom_call.1} parent=1 // pred_region
      %s1149 = ssub.s32 512, 512
      %1150 = vsyncadd [#allocation3], %s1149
      %s1151 = sshll.u32 [#allocation2], 4
      %s1152 = int_to_ptr.vmem [resolvable:$true] %s1151
      %1157 = dma.vmem_to_hbm [thread:$0]  %s1152, 512, %s3, [#allocation3], 256, 256, 16
    $region17: #{tpu_custom_call.1} parent=1 // pred_fallthru
      _
    // Predicated region
    $region18: #{tpu_custom_call.1} parent=1 // pred_check
      _
    $region19: #{tpu_custom_call.1} parent=1 // pred_check_branch
      %1159 = sbr.rel (0) target = $region21
    $region20: #{tpu_custom_call.1} parent=1 // pred_region
      %1160 = dma.done [#allocation3], 512
    $region21: #{tpu_custom_call.1} parent=1 // pred_fallthru
      _
    %1161 = vsyncpa [#allocation3], 1

</llo_original>
